<compile_context>
chip_gen: v6e
topology: v6e:2x2x1
jax: 0.10.0
libtpu: 0.0.40
codegen_flags: <defaults>
</compile_context>

<pallas_src>
import jax
import jax.numpy as jnp
from jax.experimental import pallas as pl
from jax.experimental.pallas import tpu as pltpu

K = 3          # number of classes
D_IN = 2       # input features
H = 10         # hidden width
HP = 128       # lane-padded hidden width
TM_MAX = 512   # max batch tile (sublane multiple)


def _mlp_kernel(x_ref, w1_ref, b1_ref, w2_ref, b2_ref, w3_ref, b3_ref, o_ref):
    # Layer 1 on the VPU: contraction dim is only 2, an MXU matmul would waste
    # a full 128-wide pass. (TM,1)*(1,HP) broadcasts -> (TM,HP).
    x = x_ref[...]                                 # (TM, 2) f32
    w1 = w1_ref[...]                               # (2, HP)
    h = x[:, 0:1] * w1[0:1, :] + x[:, 1:2] * w1[1:2, :] + b1_ref[...]
    h = jnp.maximum(h, 0.0)
    # Layers 2/3 on the MXU, fp32 accumulate.
    h = jnp.dot(h, w2_ref[...], preferred_element_type=jnp.float32) + b2_ref[...]
    h = jnp.maximum(h, 0.0)
    h = jnp.dot(h, w3_ref[...], preferred_element_type=jnp.float32) + b3_ref[...]
    o_ref[...] = h[:, :K]                          # only the K real logits hit HBM


def _round_up(a, b):
    return ((a + b - 1) // b) * b


def _choose_tm(n):
    """Large tiles to amortize grid-step overhead; keep >=2 grid steps when the
    batch allows so ("parallel",) can shard across both TCs on v7x."""
    n8 = _round_up(max(n, 1), 8)
    if n8 >= 2 * TM_MAX:
        return TM_MAX
    if n8 >= 16:
        return _round_up((n8 + 1) // 2, 8)   # exactly 2 tiles for mid-size batches
    return n8


def prepare_params(params):
    """Lane-pad weights/biases ONCE (outside the jitted forward).
    Weights stored as (in_features, out_features) = PyTorch weight.T."""
    w1, b1, w2, b2, w3, b3 = params
    w1_p = jnp.pad(w1.astype(jnp.float32), ((0, 0), (0, HP - H)))          # (2, 128)
    w2_p = jnp.pad(w2.astype(jnp.float32), ((0, HP - H), (0, HP - H)))     # (128, 128)
    w3_p = jnp.pad(w3.astype(jnp.float32), ((0, HP - H), (0, HP - K)))     # (128, 128)
    b1_p = jnp.pad(b1.astype(jnp.float32), (0, HP - H)).reshape(1, HP)
    b2_p = jnp.pad(b2.astype(jnp.float32), (0, HP - H)).reshape(1, HP)
    b3_p = jnp.pad(b3.astype(jnp.float32), (0, HP - K)).reshape(1, HP)
    return (w1_p, b1_p, w2_p, b2_p, w3_p, b3_p)


@jax.jit
def spiral_model_forward(x, padded_params):
    """x: (N, 2) float32. padded_params: output of prepare_params.
    Returns logits (N, 3) float32."""
    w1_p, b1_p, w2_p, b2_p, w3_p, b3_p = padded_params
    n = x.shape[0]
    tm = _choose_tm(n)
    n_pad = _round_up(n, tm)

    x_p = x.astype(jnp.float32)
    if n_pad != n:
        # Row padding only (zero rows -> zero logits rows, sliced off below).
        x_p = jnp.pad(x_p, ((0, n_pad - n), (0, 0)))

    grid = (n_pad // tm,)
    full = lambda i: (0, 0)  # weights/biases: the same (only) block every step

    out = pl.pallas_call(
        _mlp_kernel,
        out_shape=jax.ShapeDtypeStruct((n_pad, K), jnp.float32),
        grid_spec=pltpu.PrefetchScalarGridSpec(
            num_scalar_prefetch=0,
            grid=grid,
            in_specs=[
                pl.BlockSpec((tm, D_IN), lambda i: (i, 0)),  # x tile (unpadded lanes)
                pl.BlockSpec((D_IN, HP), full),              # W1 (2, 128)
                pl.BlockSpec((1, HP), full),                 # b1
                pl.BlockSpec((HP, HP), full),                # W2
                pl.BlockSpec((1, HP), full),                 # b2
                pl.BlockSpec((HP, HP), full),                # W3
                pl.BlockSpec((1, HP), full),                 # b3
            ],
            out_specs=pl.BlockSpec((tm, K), lambda i: (i, 0)),
        ),
        compiler_params=pltpu.CompilerParams(
            dimension_semantics=("parallel",)),
    )(x_p, w1_p, b1_p, w2_p, b2_p, w3_p, b3_p)

    return out if n_pad == n else out[:n]


def init_params(key):
    """Deterministic init mirroring PyTorch nn.Linear defaults:
    U(-1/sqrt(fan_in), 1/sqrt(fan_in)) for both weight and bias.
    Weights stored as (in_features, out_features)."""
    def linear(key, fan_in, fan_out):
        kw, kb = jax.random.split(key)
        bound = 1.0 / jnp.sqrt(float(fan_in))
        w = jax.random.uniform(kw, (fan_in, fan_out), jnp.float32, -bound, bound)
        b = jax.random.uniform(kb, (fan_out,), jnp.float32, -bound, bound)
        return w, b

    k1, k2, k3 = jax.random.split(key, 3)
    w1, b1 = linear(k1, D_IN, H)
    w2, b2 = linear(k2, H, H)
    w3, b3 = linear(k3, H, K)
    return (w1, b1, w2, b2, w3, b3)


def reference_forward(x, params):
    w1, b1, w2, b2, w3, b3 = params
    hi = jax.lax.Precision.HIGHEST
    h1 = jnp.maximum(jnp.dot(x, w1, precision=hi) + b1, 0.0)
    h2 = jnp.maximum(jnp.dot(h1, w2, precision=hi) + b2, 0.0)
    return jnp.dot(h2, w3, precision=hi) + b3


if __name__ == "__main__":
    key = jax.random.PRNGKey(0)
    kx, kp = jax.random.split(key)

    params = init_params(kp)
    padded = prepare_params(params)

    n = 64  # small spiral-style batch; still exercises a 2-step parallel grid
    x = jax.random.normal(kx, (n, D_IN), jnp.float32)

    out = spiral_model_forward(x, padded)
    out = jax.block_until_ready(out)

    ref = reference_forward(x, params)
    assert out.shape == (n, K), out.shape
    assert jnp.allclose(out, ref, atol=1e-5, rtol=1e-5), "mismatch vs reference"

    print("KERNEL_OK")
</pallas_src>

<mosaic_0001>
module attributes {stable_mosaic.version = 11 : i64} {
  func.func @_mlp_kernel(%arg0: i32, %arg1: memref<32x2xf32, #tpu.memory_space<vmem>>, %arg2: memref<2x128xf32, #tpu.memory_space<vmem>>, %arg3: memref<1x128xf32, #tpu.memory_space<vmem>>, %arg4: memref<128x128xf32, #tpu.memory_space<vmem>>, %arg5: memref<1x128xf32, #tpu.memory_space<vmem>>, %arg6: memref<128x128xf32, #tpu.memory_space<vmem>>, %arg7: memref<1x128xf32, #tpu.memory_space<vmem>>, %arg8: memref<32x3xf32, #tpu.memory_space<vmem>>) attributes {dimension_semantics = [#tpu.dimension_semantics<parallel>], iteration_bounds = array<i64: 2>, scalar_prefetch = 0 : i64, scratch_operands = 0 : i64, tpu.core_type = #tpu.core_type<tc>, window_params = [{transform_indices = @transform_0, window_bounds = array<i64: 32, 2>}, {pipeline_mode = #tpu.pipeline_mode<synchronous>, transform_indices = @transform_1, window_bounds = array<i64: 2, 128>}, {pipeline_mode = #tpu.pipeline_mode<synchronous>, transform_indices = @transform_2, window_bounds = array<i64: 1, 128>}, {pipeline_mode = #tpu.pipeline_mode<synchronous>, transform_indices = @transform_3, window_bounds = array<i64: 128, 128>}, {pipeline_mode = #tpu.pipeline_mode<synchronous>, transform_indices = @transform_4, window_bounds = array<i64: 1, 128>}, {pipeline_mode = #tpu.pipeline_mode<synchronous>, transform_indices = @transform_5, window_bounds = array<i64: 128, 128>}, {pipeline_mode = #tpu.pipeline_mode<synchronous>, transform_indices = @transform_6, window_bounds = array<i64: 1, 128>}, {transform_indices = @transform_7, window_bounds = array<i64: 32, 3>}]} {
    %c0 = arith.constant 0 : index
    %c0_0 = arith.constant 0 : index
    %0 = vector.load %arg1[%c0, %c0_0] : memref<32x2xf32, #tpu.memory_space<vmem>>, vector<32x2xf32>
    %c0_1 = arith.constant 0 : index
    %c0_2 = arith.constant 0 : index
    %1 = vector.load %arg2[%c0_1, %c0_2] : memref<2x128xf32, #tpu.memory_space<vmem>>, vector<2x128xf32>
    %2 = vector.extract_strided_slice %0 {offsets = [0, 0], sizes = [32, 1], strides = [1, 1]} : vector<32x2xf32> to vector<32x1xf32>
    %3 = vector.extract_strided_slice %1 {offsets = [0, 0], sizes = [1, 128], strides = [1, 1]} : vector<2x128xf32> to vector<1x128xf32>
    %4 = vector.broadcast %2 : vector<32x1xf32> to vector<32x128xf32>
    %5 = vector.broadcast %3 : vector<1x128xf32> to vector<32x128xf32>
    %6 = arith.mulf %4, %5 : vector<32x128xf32>
    %7 = vector.extract_strided_slice %0 {offsets = [0, 1], sizes = [32, 1], strides = [1, 1]} : vector<32x2xf32> to vector<32x1xf32>
    %8 = vector.extract_strided_slice %1 {offsets = [1, 0], sizes = [1, 128], strides = [1, 1]} : vector<2x128xf32> to vector<1x128xf32>
    %9 = vector.broadcast %7 : vector<32x1xf32> to vector<32x128xf32>
    %10 = vector.broadcast %8 : vector<1x128xf32> to vector<32x128xf32>
    %11 = arith.mulf %9, %10 : vector<32x128xf32>
    %12 = arith.addf %6, %11 : vector<32x128xf32>
    %c0_3 = arith.constant 0 : index
    %c0_4 = arith.constant 0 : index
    %13 = vector.load %arg3[%c0_3, %c0_4] : memref<1x128xf32, #tpu.memory_space<vmem>>, vector<1x128xf32>
    %14 = vector.broadcast %13 : vector<1x128xf32> to vector<32x128xf32>
    %15 = arith.addf %12, %14 : vector<32x128xf32>
    %cst = arith.constant 0.000000e+00 : f32
    %16 = vector.broadcast %cst : f32 to vector<32x128xf32>
    %17 = arith.maximumf %15, %16 : vector<32x128xf32>
    %c0_5 = arith.constant 0 : index
    %c0_6 = arith.constant 0 : index
    %18 = vector.load %arg4[%c0_5, %c0_6] : memref<128x128xf32, #tpu.memory_space<vmem>>, vector<128x128xf32>
    %cst_7 = arith.constant dense<0.000000e+00> : vector<32x128xf32>
    %19 = tpu.matmul %17, %18, %cst_7 {dimension_numbers = #tpu.dot_dimension_numbers<[1], [0], [0], [1], [0, 0, 1, 1], [], []>} : vector<32x128xf32>, vector<128x128xf32>, vector<32x128xf32> -> vector<32x128xf32>
    %c0_8 = arith.constant 0 : index
    %c0_9 = arith.constant 0 : index
    %20 = vector.load %arg5[%c0_8, %c0_9] : memref<1x128xf32, #tpu.memory_space<vmem>>, vector<1x128xf32>
    %21 = vector.broadcast %20 : vector<1x128xf32> to vector<32x128xf32>
    %22 = arith.addf %19, %21 : vector<32x128xf32>
    %cst_10 = arith.constant 0.000000e+00 : f32
    %23 = vector.broadcast %cst_10 : f32 to vector<32x128xf32>
    %24 = arith.maximumf %22, %23 : vector<32x128xf32>
    %c0_11 = arith.constant 0 : index
    %c0_12 = arith.constant 0 : index
    %25 = vector.load %arg6[%c0_11, %c0_12] : memref<128x128xf32, #tpu.memory_space<vmem>>, vector<128x128xf32>
    %cst_13 = arith.constant dense<0.000000e+00> : vector<32x128xf32>
    %26 = tpu.matmul %24, %25, %cst_13 {dimension_numbers = #tpu.dot_dimension_numbers<[1], [0], [0], [1], [0, 0, 1, 1], [], []>} : vector<32x128xf32>, vector<128x128xf32>, vector<32x128xf32> -> vector<32x128xf32>
    %c0_14 = arith.constant 0 : index
    %c0_15 = arith.constant 0 : index
    %27 = vector.load %arg7[%c0_14, %c0_15] : memref<1x128xf32, #tpu.memory_space<vmem>>, vector<1x128xf32>
    %28 = vector.broadcast %27 : vector<1x128xf32> to vector<32x128xf32>
    %29 = arith.addf %26, %28 : vector<32x128xf32>
    %30 = vector.extract_strided_slice %29 {offsets = [0, 0], sizes = [32, 3], strides = [1, 1]} : vector<32x128xf32> to vector<32x3xf32>
    %c0_16 = arith.constant 0 : index
    %c0_17 = arith.constant 0 : index
    %31 = vector.load %arg8[%c0_16, %c0_17] : memref<32x3xf32, #tpu.memory_space<vmem>>, vector<32x3xf32>
    tpu.vector_store %arg8[%c0_16, %c0_17], %30 {strides = array<i32>} : memref<32x3xf32, #tpu.memory_space<vmem>>, vector<32x3xf32>,
    return
  }
  func.func @transform_0(%arg0: i32) -> (i32, i32) {
    %c0_i32 = arith.constant 0 : i32
    %c0_i32_0 = arith.constant 0 : i32
    return %arg0, %c0_i32 : i32, i32
  }
  func.func @transform_1(%arg0: i32) -> (i32, i32) {
    %c0_i32 = arith.constant 0 : i32
    %c0_i32_0 = arith.constant 0 : i32
    %c0_i32_1 = arith.constant 0 : i32
    return %c0_i32, %c0_i32_0 : i32, i32
  }
  func.func @transform_2(%arg0: i32) -> (i32, i32) {
    %c0_i32 = arith.constant 0 : i32
    %c0_i32_0 = arith.constant 0 : i32
    %c0_i32_1 = arith.constant 0 : i32
    return %c0_i32, %c0_i32_0 : i32, i32
  }
  func.func @transform_3(%arg0: i32) -> (i32, i32) {
    %c0_i32 = arith.constant 0 : i32
    %c0_i32_0 = arith.constant 0 : i32
    %c0_i32_1 = arith.constant 0 : i32
    return %c0_i32, %c0_i32_0 : i32, i32
  }
  func.func @transform_4(%arg0: i32) -> (i32, i32) {
    %c0_i32 = arith.constant 0 : i32
    %c0_i32_0 = arith.constant 0 : i32
    %c0_i32_1 = arith.constant 0 : i32
    return %c0_i32, %c0_i32_0 : i32, i32
  }
  func.func @transform_5(%arg0: i32) -> (i32, i32) {
    %c0_i32 = arith.constant 0 : i32
    %c0_i32_0 = arith.constant 0 : i32
    %c0_i32_1 = arith.constant 0 : i32
    return %c0_i32, %c0_i32_0 : i32, i32
  }
  func.func @transform_6(%arg0: i32) -> (i32, i32) {
    %c0_i32 = arith.constant 0 : i32
    %c0_i32_0 = arith.constant 0 : i32
    %c0_i32_1 = arith.constant 0 : i32
    return %c0_i32, %c0_i32_0 : i32, i32
  }
  func.func @transform_7(%arg0: i32) -> (i32, i32) {
    %c0_i32 = arith.constant 0 : i32
    %c0_i32_0 = arith.constant 0 : i32
    return %arg0, %c0_i32 : i32, i32
  }
}

</mosaic_0001>

<llo_original>
// kernel: spiral_model_forward.1
$region0: #{spiral_model_forward.1}
  #allocation0 [shape = 'u32[]', space=smem, size = 0x4, offset = 0x4, fixed_abs, tag = 'smem constant byte address 0x4 - core index']
  #allocation1 [shape = 'u32[144,128]{1,0:T(1,128)}', space=vmem, size = 0x12000, scoped, tag = 'internal scratch']
  %s0 = inlined_call_operand.vmem [shape: f32[64,2], index: 0, kind: input, shape index: {}]
  %s1 = inlined_call_operand.vmem [shape: f32[2,128], index: 1, kind: input, shape index: {}]
  %s2 = inlined_call_operand.vmem [shape: f32[1,128], index: 2, kind: input, shape index: {}]
  %s3 = inlined_call_operand.hbm [shape: f32[128,128], index: 3, kind: input, shape index: {}]
  %s4 = inlined_call_operand.vmem [shape: f32[1,128], index: 4, kind: input, shape index: {}]
  %s5 = inlined_call_operand.hbm [shape: f32[128,128], index: 5, kind: input, shape index: {}]
  %s6 = inlined_call_operand.vmem [shape: f32[1,128], index: 6, kind: input, shape index: {}]
  %s7 = inlined_call_operand.vmem [shape: f32[64,3], index: 7, kind: output, shape index: {}]
  %s8 = sld [smem:[#allocation0]]
  $region69: #{spiral_model_forward.1} parent=0
    _
  %s10 = ssub.s32 1, %s8
  %s11 = scalar_select 0, %s10, %s8
  $region1: #{spiral_model_forward.1} parent=0
    #allocation2 [shape = 'u8[65536]{0}', space=vmem, size = 0x10000, scoped, tag = 'input window, operand 3, single buffered']
    #allocation3 [shape = 's32[2]{0}', space=sflag, size = 0x8, scoped, tag = 'scoped memory for spiral_model_forward.1']
    #allocation4 [shape = 'u8[65536]{0}', space=vmem, size = 0x10000, scoped, tag = 'input window, operand 5, single buffered']
    #allocation5 [shape = 's32[1]{0}', space=sflag, size = 0x4, scoped, tag = 'scoped memory for spiral_model_forward.1']
    %12 = vsyncpa [#allocation3], 0
    %13 = vsyncpa [#allocation5], 0
    loop: start=0, step=1, limit=4
    $region2: #{spiral_model_forward.1} parent=1 // loop_pre_header
      _
    $region3: #{spiral_model_forward.1} parent=1 // loop_header
      %s15 = sphi 0, %s19
      %p16 = scmp.ge.s32.totalorder %s15, 4
      %s25 = sphi 0, %s27
      %s28 = sphi 0, %s25
      %s29 = sphi 0, %s28
      %s45 = sphi 0, %s29
      %s49 = sphi 0, %s49
      %s51 = sphi 0, %s49
      %s52 = sphi 0, %s51
      %s66 = sphi 0, %s52
      %s70 = sphi 0, %s70
      %s72 = sphi 0, %s70
      %s73 = sphi 0, %s72
      %s87 = sphi 0, %s73
      %s91 = sphi 0, %s91
      %s93 = sphi 0, %s91
      %s94 = sphi 0, %s93
      %s108 = sphi 0, %s94
      %s112 = sphi 0, %s112
      %s114 = sphi 0, %s112
      %s115 = sphi 0, %s114
      %s129 = sphi 0, %s115
      %s133 = sphi 0, %s133
      %s135 = sphi 0, %s133
      %s136 = sphi 0, %s135
      %s150 = sphi 0, %s136
      %s154 = sphi 0, %s154
      %s156 = sphi 0, %s154
      %s157 = sphi 0, %s156
      %s171 = sphi 0, %s157
      %s177 = sphi 0, %s179
      %s180 = sphi 0, %s177
      %s181 = sphi 0, %s180
      %s197 = sphi 0, %s181
    $region4: #{spiral_model_forward.1} parent=1 // loop_header_branch
      %18 = sbr.rel (%p16) target = $region8
    $region5: #{spiral_model_forward.1} parent=1 // loop_body
      %s20 = ssub.s32 %s15, 1
      %s21 = ssub.s32 %s15, 2
      %s22 = sadd.s32 %s15, 1
      %s23 = ssub.s32 %s15, %s22
      %p24 = scmp.eq.s32.totalorder %s23, 0
      %s26 = sadd.s32 %s25, 1
      %s27 = scalar_select %p24, %s25, %s26
      %p30 = pneg %p24
      %p31 = scmp.eq.s32.totalorder %s15, 1
      %p32 = por %p30, %p31
      %p33 = scmp.ne.s32.totalorder %s25, %s28
      %p34 = scmp.eq.s32.totalorder %s15, 0
      %p35 = por %p33, %p34
      %p36 = scmp.ne.s32.totalorder %s25, %s28
      %p37 = scmp.eq.s32.totalorder %s20, 1
      %p38 = por %p36, %p37
      %p39 = scmp.ne.s32.totalorder %s28, %s29
      %p40 = scmp.eq.s32.totalorder %s20, 0
      %p41 = por %p39, %p40
      %p42 = scmp.ne.s32.totalorder %s28, %s29
      %p43 = scmp.eq.s32.totalorder %s21, 1
      %p44 = por %p42, %p43
      %p46 = scmp.ne.s32.totalorder %s29, %s45
      %p47 = scmp.eq.s32.totalorder %s21, 0
      %p48 = por %p46, %p47
      %s50 = sadd.s32 %s49, 1
      %p53 = scmp.eq.s32.totalorder %s15, 1
      %p54 = scmp.ne.s32.totalorder %s49, %s51
      %p55 = scmp.eq.s32.totalorder %s15, 0
      %p56 = por %p54, %p55
      %p57 = scmp.ne.s32.totalorder %s49, %s51
      %p58 = scmp.eq.s32.totalorder %s20, 1
      %p59 = por %p57, %p58
      %p60 = scmp.ne.s32.totalorder %s51, %s52
      %p61 = scmp.eq.s32.totalorder %s20, 0
      %p62 = por %p60, %p61
      %p63 = scmp.ne.s32.totalorder %s51, %s52
      %p64 = scmp.eq.s32.totalorder %s21, 1
      %p65 = por %p63, %p64
      %p67 = scmp.ne.s32.totalorder %s52, %s66
      %p68 = scmp.eq.s32.totalorder %s21, 0
      %p69 = por %p67, %p68
      %s71 = sadd.s32 %s70, 1
      %p74 = scmp.eq.s32.totalorder %s15, 1
      %p75 = scmp.ne.s32.totalorder %s70, %s72
      %p76 = scmp.eq.s32.totalorder %s15, 0
      %p77 = por %p75, %p76
      %p78 = scmp.ne.s32.totalorder %s70, %s72
      %p79 = scmp.eq.s32.totalorder %s20, 1
      %p80 = por %p78, %p79
      %p81 = scmp.ne.s32.totalorder %s72, %s73
      %p82 = scmp.eq.s32.totalorder %s20, 0
      %p83 = por %p81, %p82
      %p84 = scmp.ne.s32.totalorder %s72, %s73
      %p85 = scmp.eq.s32.totalorder %s21, 1
      %p86 = por %p84, %p85
      %p88 = scmp.ne.s32.totalorder %s73, %s87
      %p89 = scmp.eq.s32.totalorder %s21, 0
      %p90 = por %p88, %p89
      %s92 = sadd.s32 %s91, 1
      %p95 = scmp.eq.s32.totalorder %s15, 1
      %p96 = scmp.ne.s32.totalorder %s91, %s93
      %p97 = scmp.eq.s32.totalorder %s15, 0
      %p98 = por %p96, %p97
      %p99 = scmp.ne.s32.totalorder %s91, %s93
      %p100 = scmp.eq.s32.totalorder %s20, 1
      %p101 = por %p99, %p100
      %p102 = scmp.ne.s32.totalorder %s93, %s94
      %p103 = scmp.eq.s32.totalorder %s20, 0
      %p104 = por %p102, %p103
      %p105 = scmp.ne.s32.totalorder %s93, %s94
      %p106 = scmp.eq.s32.totalorder %s21, 1
      %p107 = por %p105, %p106
      %p109 = scmp.ne.s32.totalorder %s94, %s108
      %p110 = scmp.eq.s32.totalorder %s21, 0
      %p111 = por %p109, %p110
      %s113 = sadd.s32 %s112, 1
      %p116 = scmp.eq.s32.totalorder %s15, 1
      %p117 = scmp.ne.s32.totalorder %s112, %s114
      %p118 = scmp.eq.s32.totalorder %s15, 0
      %p119 = por %p117, %p118
      %p120 = scmp.ne.s32.totalorder %s112, %s114
      %p121 = scmp.eq.s32.totalorder %s20, 1
      %p122 = por %p120, %p121
      %p123 = scmp.ne.s32.totalorder %s114, %s115
      %p124 = scmp.eq.s32.totalorder %s20, 0
      %p125 = por %p123, %p124
      %p126 = scmp.ne.s32.totalorder %s114, %s115
      %p127 = scmp.eq.s32.totalorder %s21, 1
      %p128 = por %p126, %p127
      %p130 = scmp.ne.s32.totalorder %s115, %s129
      %p131 = scmp.eq.s32.totalorder %s21, 0
      %p132 = por %p130, %p131
      %s134 = sadd.s32 %s133, 1
      %p137 = scmp.eq.s32.totalorder %s15, 1
      %p138 = scmp.ne.s32.totalorder %s133, %s135
      %p139 = scmp.eq.s32.totalorder %s15, 0
      %p140 = por %p138, %p139
      %p141 = scmp.ne.s32.totalorder %s133, %s135
      %p142 = scmp.eq.s32.totalorder %s20, 1
      %p143 = por %p141, %p142
      %p144 = scmp.ne.s32.totalorder %s135, %s136
      %p145 = scmp.eq.s32.totalorder %s20, 0
      %p146 = por %p144, %p145
      %p147 = scmp.ne.s32.totalorder %s135, %s136
      %p148 = scmp.eq.s32.totalorder %s21, 1
      %p149 = por %p147, %p148
      %p151 = scmp.ne.s32.totalorder %s136, %s150
      %p152 = scmp.eq.s32.totalorder %s21, 0
      %p153 = por %p151, %p152
      %s155 = sadd.s32 %s154, 1
      %p158 = scmp.eq.s32.totalorder %s15, 1
      %p159 = scmp.ne.s32.totalorder %s154, %s156
      %p160 = scmp.eq.s32.totalorder %s15, 0
      %p161 = por %p159, %p160
      %p162 = scmp.ne.s32.totalorder %s154, %s156
      %p163 = scmp.eq.s32.totalorder %s20, 1
      %p164 = por %p162, %p163
      %p165 = scmp.ne.s32.totalorder %s156, %s157
      %p166 = scmp.eq.s32.totalorder %s20, 0
      %p167 = por %p165, %p166
      %p168 = scmp.ne.s32.totalorder %s156, %s157
      %p169 = scmp.eq.s32.totalorder %s21, 1
      %p170 = por %p168, %p169
      %p172 = scmp.ne.s32.totalorder %s157, %s171
      %p173 = scmp.eq.s32.totalorder %s21, 0
      %p174 = por %p172, %p173
      %s175 = ssub.s32 %s15, %s22
      %p176 = scmp.eq.s32.totalorder %s175, 0
      %s178 = sadd.s32 %s177, 1
      %s179 = scalar_select %p176, %s177, %s178
      %p182 = pneg %p176
      %p183 = scmp.eq.s32.totalorder %s15, 1
      %p184 = por %p182, %p183
      %p185 = scmp.ne.s32.totalorder %s177, %s180
      %p186 = scmp.eq.s32.totalorder %s15, 0
      %p187 = por %p185, %p186
      %p188 = scmp.ne.s32.totalorder %s177, %s180
      %p189 = scmp.eq.s32.totalorder %s20, 1
      %p190 = por %p188, %p189
      %p191 = scmp.ne.s32.totalorder %s180, %s181
      %p192 = scmp.eq.s32.totalorder %s20, 0
      %p193 = por %p191, %p192
      %p194 = scmp.ne.s32.totalorder %s180, %s181
      %p195 = scmp.eq.s32.totalorder %s21, 1
      %p196 = por %p194, %p195
      %p198 = scmp.ne.s32.totalorder %s181, %s197
      %p199 = scmp.eq.s32.totalorder %s21, 0
      %p200 = por %p198, %p199
      %p201 = scmp.le.s32.totalorder 1, %s15
      %p202 = scmp.lt.s32.totalorder %s15, 3
      %p203 = pnand %p201, %p202
      %p204 = pneg %p203
      // Predicated region
      $region9: #{spiral_model_forward.1} parent=5 // pred_check
        _
      $region10: #{spiral_model_forward.1} parent=5 // pred_check_branch
        %206 = sbr.rel (%p203) target = $region12
      $region11: #{spiral_model_forward.1} parent=5 // pred_region
        %s207 = ssub.s32 %s15, 1
        // Predicated region
        $region13: #{spiral_model_forward.1} parent=11 // pred_check
          %p208 = pneg %p62
        $region14: #{spiral_model_forward.1} parent=11 // pred_check_branch
          %210 = sbr.rel (%p208) target = $region16
        $region15: #{spiral_model_forward.1} parent=11 // pred_region
          _
        $region16: #{spiral_model_forward.1} parent=11 // pred_fallthru
          _
        // Predicated region
        $region17: #{spiral_model_forward.1} parent=11 // pred_check
          %p211 = pneg %p83
        $region18: #{spiral_model_forward.1} parent=11 // pred_check_branch
          %213 = sbr.rel (%p211) target = $region20
        $region19: #{spiral_model_forward.1} parent=11 // pred_region
          _
        $region20: #{spiral_model_forward.1} parent=11 // pred_fallthru
          _
        // Predicated region
        $region21: #{spiral_model_forward.1} parent=11 // pred_check
          %p214 = pneg %p104
        $region22: #{spiral_model_forward.1} parent=11 // pred_check_branch
          %216 = sbr.rel (%p214) target = $region24
        $region23: #{spiral_model_forward.1} parent=11 // pred_region
          %s218 = ssub.s32 2048, 2048
          %219 = vsyncadd [#allocation3], %s218
          %s220 = sshll.u32 [#allocation2], 4
          %s221 = int_to_ptr.vmem [resolvable:$true] %s220
          %226 = dma.hbm_to_vmem [thread:$0]  %s3, 2048, %s221, [#allocation3], 128, 128, 8
        $region24: #{spiral_model_forward.1} parent=11 // pred_fallthru
          _
        // Predicated region
        $region25: #{spiral_model_forward.1} parent=11 // pred_check
          %p227 = pneg %p125
        $region26: #{spiral_model_forward.1} parent=11 // pred_check_branch
          %229 = sbr.rel (%p227) target = $region28
        $region27: #{spiral_model_forward.1} parent=11 // pred_region
          _
        $region28: #{spiral_model_forward.1} parent=11 // pred_fallthru
          _
        // Predicated region
        $region29: #{spiral_model_forward.1} parent=11 // pred_check
          %p230 = pneg %p146
        $region30: #{spiral_model_forward.1} parent=11 // pred_check_branch
          %232 = sbr.rel (%p230) target = $region32
        $region31: #{spiral_model_forward.1} parent=11 // pred_region
          %s234 = ssub.s32 2048, 2048
          %235 = vsyncadd [#allocation5], %s234
          %s236 = sshll.u32 [#allocation4], 4
          %s237 = int_to_ptr.vmem [resolvable:$true] %s236
          %242 = dma.hbm_to_vmem [thread:$0]  %s5, 2048, %s237, [#allocation5], 128, 128, 8
        $region32: #{spiral_model_forward.1} parent=11 // pred_fallthru
          _
        // Predicated region
        $region33: #{spiral_model_forward.1} parent=11 // pred_check
          %p243 = pneg %p167
        $region34: #{spiral_model_forward.1} parent=11 // pred_check_branch
          %245 = sbr.rel (%p243) target = $region36
        $region35: #{spiral_model_forward.1} parent=11 // pred_region
          _
        $region36: #{spiral_model_forward.1} parent=11 // pred_fallthru
          _
      $region12: #{spiral_model_forward.1} parent=5 // pred_fallthru
        _
      %p246 = scmp.lt.s32.totalorder %s15, 2
      // Predicated region
      $region37: #{spiral_model_forward.1} parent=5 // pred_check
        %p247 = pneg %p246
      $region38: #{spiral_model_forward.1} parent=5 // pred_check_branch
        %249 = sbr.rel (%p247) target = $region40
      $region39: #{spiral_model_forward.1} parent=5 // pred_region
        // Predicated region
        $region41: #{spiral_model_forward.1} parent=39 // pred_check
          %p250 = pneg %p35
        $region42: #{spiral_model_forward.1} parent=39 // pred_check_branch
          %252 = sbr.rel (%p250) target = $region44
        $region43: #{spiral_model_forward.1} parent=39 // pred_region
          %s253 = smul.u32 4, %s15
          %p254 = scmp.lt.s32.totalorder %s253, 7
          %s255 = scalar_select %p254, %s253, 7
          %s256 = smul.addr %s255, 8
          %s257 = scalar_lea.vmem %s0, %s256
          %s258 = smul.u32 4, %s15
        $region44: #{spiral_model_forward.1} parent=39 // pred_fallthru
          _
      $region40: #{spiral_model_forward.1} parent=5 // pred_fallthru
        _
      %p259 = scmp.le.s32.totalorder 1, %s15
      %p260 = scmp.lt.s32.totalorder %s15, 3
      %p261 = pnand %p259, %p260
      %p262 = pneg %p261
      // Predicated region
      $region45: #{spiral_model_forward.1} parent=5 // pred_check
        _
      $region46: #{spiral_model_forward.1} parent=5 // pred_check_branch
        %264 = sbr.rel (%p261) target = $region48
      $region47: #{spiral_model_forward.1} parent=5 // pred_region
        %s265 = ssub.s32 %s15, 1
        // Predicated region
        $region49: #{spiral_model_forward.1} parent=47 // pred_check
          %p266 = pneg %p104
        $region50: #{spiral_model_forward.1} parent=47 // pred_check_branch
          %268 = sbr.rel (%p266) target = $region52
        $region51: #{spiral_model_forward.1} parent=47 // pred_region
          %269 = dma.done [#allocation3], 2048
        $region52: #{spiral_model_forward.1} parent=47 // pred_fallthru
          _
        // Predicated region
        $region53: #{spiral_model_forward.1} parent=47 // pred_check
          %p270 = pneg %p146
        $region54: #{spiral_model_forward.1} parent=47 // pred_check_branch
          %272 = sbr.rel (%p270) target = $region56
        $region55: #{spiral_model_forward.1} parent=47 // pred_region
          %273 = dma.done [#allocation5], 2048
        $region56: #{spiral_model_forward.1} parent=47 // pred_fallthru
          _
        %s274 = smul.u32 4, %s20
        %p275 = scmp.lt.s32.totalorder %s274, 7
        %s276 = scalar_select %p275, %s274, 7
        %s277 = smul.addr %s276, 8
        %s278 = scalar_lea.vmem %s0, %s277
        %p279 = pneg %p41
        %p280 = pneg %p38
        %p281 = pneg %p62
        %p282 = pneg %p59
        %p283 = pneg %p83
        %p284 = pneg %p80
        %p285 = pneg %p104
        %p286 = pneg %p101
        %p287 = pneg %p125
        %p288 = pneg %p122
        %p289 = pneg %p146
        %p290 = pneg %p143
        %p291 = pneg %p167
        %p292 = pneg %p164
        %p293 = pneg %p193
        %p294 = pneg %p190
        %s295 = smul.u32 4, %s20
        %p296 = scmp.lt.s32.totalorder %s295, 7
        %s297 = scalar_select %p296, %s295, 7
        %s298 = smul.addr %s297, 8
        %s299 = scalar_lea.vmem %s7, %s298
        %s300 = smul.u32 4, %s20
        %p301 = scmp.lt.s32.totalorder %s300, 7
        %s302 = scalar_select %p301, %s300, 7
        %s303 = smul.addr %s302, 8
        %s304 = scalar_lea.vmem %s0, %s303
        %s305 = smul.u32 4, %s20
        %s306 = smul.u32 4, %s20
        %p307 = scmp.lt.s32.totalorder %s306, 7
        %s308 = scalar_select %p307, %s306, 7
        %s309 = smul.addr %s308, 8
        %s310 = scalar_lea.vmem %s7, %s309
        %s311 = smul.u32 4, %s20
        %v312 = vld [vmem:[%s304] sm:$0xff]
        %v313 = vld [vmem:[%s304 + $0x8] sm:$0xff]
        %v314 = vld [vmem:[%s304 + $0x10] sm:$0xff]
        %v315 = vld [vmem:[%s304 + $0x18] sm:$0xff]
        %v316 = vld [vmem:[%s1] sm:$0x3]
        %318 = vset.pattern.permute.xlu0 0
        %319 = vperm.xlu0 %318, %v312
        %v320 = vpop.permute.xlu0 %319
        %323 = vset.pattern.permute.xlu0 0
        %324 = vperm.xlu0 %323, %v313
        %v325 = vpop.permute.xlu0 %324
        %328 = vset.pattern.permute.xlu0 0
        %329 = vperm.xlu0 %328, %v314
        %v330 = vpop.permute.xlu0 %329
        %333 = vset.pattern.permute.xlu0 0
        %334 = vperm.xlu0 %333, %v315
        %v335 = vpop.permute.xlu0 %334
        %v337 = vlaneseq
        %v338 = vshrl.u32 %v337, 7
        %v339 = vsub.s32 0, %v338
        %v340 = vrot.slane %v316, %v339
        %v341 = vmul.f32 %v320, %v340
        %v342 = vmul.f32 %v325, %v340
        %v343 = vmul.f32 %v330, %v340
        %v344 = vmul.f32 %v335, %v340
        %345 = vset.pattern.permute.xlu0 1
        %346 = vperm.xlu0 %345, %v312
        %v347 = vpop.permute.xlu0 %346
        %349 = vset.pattern.permute.xlu0 1
        %350 = vperm.xlu0 %349, %v313
        %v351 = vpop.permute.xlu0 %350
        %353 = vset.pattern.permute.xlu0 1
        %354 = vperm.xlu0 %353, %v314
        %v355 = vpop.permute.xlu0 %354
        %357 = vset.pattern.permute.xlu0 1
        %358 = vperm.xlu0 %357, %v315
        %v359 = vpop.permute.xlu0 %358
        %v361 = vlaneseq
        %v362 = vshrl.u32 %v361, 7
        %v363 = vsub.s32 1, %v362
        %v364 = vrot.slane %v316, %v363
        %v365 = vmul.f32 %v347, %v364
        %v366 = vmul.f32 %v351, %v364
        %v367 = vmul.f32 %v355, %v364
        %v368 = vmul.f32 %v359, %v364
        %v369 = vadd.f32 %v341, %v365
        %v370 = vadd.f32 %v342, %v366
        %v371 = vadd.f32 %v343, %v367
        %v372 = vadd.f32 %v344, %v368
        %v373 = vld [vmem:[%s2] sm:$0x1]
        %v375 = vlaneseq
        %v376 = vshrl.u32 %v375, 7
        %v377 = vsub.s32 0, %v376
        %v378 = vrot.slane %v373, %v377
        %v380 = vadd.f32 %v369, %v378
        %v381 = vadd.f32 %v370, %v378
        %v382 = vadd.f32 %v371, %v378
        %v383 = vadd.f32 %v372, %v378
        %v384 = vmax.f32 %v380, 0.0
        %v385 = vmax.f32 %v381, 0.0
        %v386 = vmax.f32 %v382, 0.0
        %v387 = vmax.f32 %v383, 0.0
        %v388 = vld [vmem:[#allocation2] sm:$0xff]
        %v389 = vld [vmem:[#allocation2 + $0x8] sm:$0xff]
        %v390 = vld [vmem:[#allocation2 + $0x10] sm:$0xff]
        %v391 = vld [vmem:[#allocation2 + $0x18] sm:$0xff]
        %v392 = vld [vmem:[#allocation2 + $0x20] sm:$0xff]
        %v393 = vld [vmem:[#allocation2 + $0x28] sm:$0xff]
        %v394 = vld [vmem:[#allocation2 + $0x30] sm:$0xff]
        %v395 = vld [vmem:[#allocation2 + $0x38] sm:$0xff]
        %v396 = vld [vmem:[#allocation2 + $0x40] sm:$0xff]
        %v397 = vld [vmem:[#allocation2 + $0x48] sm:$0xff]
        %v398 = vld [vmem:[#allocation2 + $0x50] sm:$0xff]
        %v399 = vld [vmem:[#allocation2 + $0x58] sm:$0xff]
        %v400 = vld [vmem:[#allocation2 + $0x60] sm:$0xff]
        %v401 = vld [vmem:[#allocation2 + $0x68] sm:$0xff]
        %v402 = vld [vmem:[#allocation2 + $0x70] sm:$0xff]
        %v403 = vld [vmem:[#allocation2 + $0x78] sm:$0xff]
        %v404 = vld [vmem:[%s4] sm:$0x1]
        %v406 = vlaneseq
        %v407 = vshrl.u32 %v406, 7
        %v408 = vsub.s32 0, %v407
        %v409 = vrot.slane %v404, %v408
        %411 = vmatprep.subr.mxu0 0.0
        %412 = vmatpush1.msra.mxu0 %v403
        %413 = vmatprep.subr.mxu0 0.0
        %414 = vmatpush1.msra.mxu0 %v402
        %415 = vmatprep.subr.mxu0 0.0
        %416 = vmatpush1.msra.mxu0 %v401
        %417 = vmatprep.subr.mxu0 0.0
        %418 = vmatpush1.msra.mxu0 %v400
        %419 = vmatprep.subr.mxu0 0.0
        %420 = vmatpush1.msra.mxu0 %v399
        %421 = vmatprep.subr.mxu0 0.0
        %422 = vmatpush1.msra.mxu0 %v398
        %423 = vmatprep.subr.mxu0 0.0
        %424 = vmatpush1.msra.mxu0 %v397
        %425 = vmatprep.subr.mxu0 0.0
        %426 = vmatpush1.msra.mxu0 %v396
        %427 = vmatprep.subr.mxu0 0.0
        %428 = vmatpush1.msra.mxu0 %v395
        %429 = vmatprep.subr.mxu0 0.0
        %430 = vmatpush1.msra.mxu0 %v394
        %431 = vmatprep.subr.mxu0 0.0
        %432 = vmatpush1.msra.mxu0 %v393
        %433 = vmatprep.subr.mxu0 0.0
        %434 = vmatpush1.msra.mxu0 %v392
        %435 = vmatprep.subr.mxu0 0.0
        %436 = vmatpush1.msra.mxu0 %v391
        %437 = vmatprep.subr.mxu0 0.0
        %438 = vmatpush1.msra.mxu0 %v390
        %439 = vmatprep.subr.mxu0 0.0
        %440 = vmatpush1.msra.mxu0 %v389
        %441 = vmatprep.subr.mxu0 0.0
        %442 = vmatpush1.msra.mxu0 %v388
        %443 = vmatprep.subr.mxu0 0.0
        %444 = vmatpush2.msra.mxu0 0.0
        %445 = vmatprep.subr.mxu0 0.0
        %446 = vmatpush2.msra.mxu0 0.0
        %447 = vmatprep.subr.mxu0 0.0
        %448 = vmatpush2.msra.mxu0 0.0
        %449 = vmatprep.subr.mxu0 0.0
        %450 = vmatpush2.msra.mxu0 0.0
        %451 = vmatprep.subr.mxu0 0.0
        %452 = vmatpush2.msra.mxu0 0.0
        %453 = vmatprep.subr.mxu0 0.0
        %454 = vmatpush2.msra.mxu0 0.0
        %455 = vmatprep.subr.mxu0 0.0
        %456 = vmatpush2.msra.mxu0 0.0
        %457 = vmatprep.subr.mxu0 0.0
        %458 = vmatpush2.msra.mxu0 0.0
        %459 = vmatprep.subr.mxu0 0.0
        %460 = vmatpush2.msra.mxu0 0.0
        %461 = vmatprep.subr.mxu0 0.0
        %462 = vmatpush2.msra.mxu0 0.0
        %463 = vmatprep.subr.mxu0 0.0
        %464 = vmatpush2.msra.mxu0 0.0
        %465 = vmatprep.subr.mxu0 0.0
        %466 = vmatpush2.msra.mxu0 0.0
        %467 = vmatprep.subr.mxu0 0.0
        %468 = vmatpush2.msra.mxu0 0.0
        %469 = vmatprep.subr.mxu0 0.0
        %470 = vmatpush2.msra.mxu0 0.0
        %471 = vmatprep.subr.mxu0 0.0
        %472 = vmatpush2.msra.mxu0 0.0
        %473 = vmatprep.subr.mxu0 0.0
        %474 = vmatpush2.msra.mxu0 0.0
        %475 = vmatprep.mubr.f32.mxu0 0.0
        %476 = vmatmul.mubr.f32.gmra.mxu0 %v384
        %v477 = vpop.f32.mrf.mxu0
        %v478 = vadd.f32 %v409, %v477
        %v479 = vpop.f32.mrf.mxu0
        %480 = vmatprep.mubr.f32.mxu0 0.0
        %481 = vmatmul.mubr.f32.gmra.mxu0 %v385
        %v482 = vpop.f32.mrf.mxu0
        %v483 = vadd.f32 %v409, %v482
        %v484 = vpop.f32.mrf.mxu0
        %485 = vmatprep.mubr.f32.mxu0 0.0
        %486 = vmatmul.mubr.f32.gmra.mxu0 %v386
        %v487 = vpop.f32.mrf.mxu0
        %v488 = vadd.f32 %v409, %v487
        %v489 = vpop.f32.mrf.mxu0
        %490 = vmatprep.mubr.f32.mxu0 0.0
        %491 = vmatmul.mubr.f32.gmra.mxu0 %v387
        %v492 = vpop.f32.mrf.mxu0
        %v493 = vadd.f32 %v409, %v492
        %v494 = vpop.f32.mrf.mxu0
        %495 = vdwg.mxu0
        %v496 = vmax.f32 %v478, 0.0
        %v497 = vmax.f32 %v483, 0.0
        %v498 = vmax.f32 %v488, 0.0
        %v499 = vmax.f32 %v493, 0.0
        %v500 = vld [vmem:[#allocation4] sm:$0xff]
        %v501 = vld [vmem:[#allocation4 + $0x8] sm:$0xff]
        %v502 = vld [vmem:[#allocation4 + $0x10] sm:$0xff]
        %v503 = vld [vmem:[#allocation4 + $0x18] sm:$0xff]
        %v504 = vld [vmem:[#allocation4 + $0x20] sm:$0xff]
        %v505 = vld [vmem:[#allocation4 + $0x28] sm:$0xff]
        %v506 = vld [vmem:[#allocation4 + $0x30] sm:$0xff]
        %v507 = vld [vmem:[#allocation4 + $0x38] sm:$0xff]
        %v508 = vld [vmem:[#allocation4 + $0x40] sm:$0xff]
        %v509 = vld [vmem:[#allocation4 + $0x48] sm:$0xff]
        %v510 = vld [vmem:[#allocation4 + $0x50] sm:$0xff]
        %v511 = vld [vmem:[#allocation4 + $0x58] sm:$0xff]
        %v512 = vld [vmem:[#allocation4 + $0x60] sm:$0xff]
        %v513 = vld [vmem:[#allocation4 + $0x68] sm:$0xff]
        %v514 = vld [vmem:[#allocation4 + $0x70] sm:$0xff]
        %v515 = vld [vmem:[#allocation4 + $0x78] sm:$0xff]
        %v516 = vld [vmem:[%s6] sm:$0x1]
        %v518 = vlaneseq
        %v519 = vshrl.u32 %v518, 7
        %v520 = vsub.s32 0, %v519
        %v521 = vrot.slane %v516, %v520
        %523 = vmatprep.subr.mxu0 0.0
        %524 = vmatpush1.msra.mxu0 %v515
        %525 = vmatprep.subr.mxu0 0.0
        %526 = vmatpush1.msra.mxu0 %v514
        %527 = vmatprep.subr.mxu0 0.0
        %528 = vmatpush1.msra.mxu0 %v513
        %529 = vmatprep.subr.mxu0 0.0
        %530 = vmatpush1.msra.mxu0 %v512
        %531 = vmatprep.subr.mxu0 0.0
        %532 = vmatpush1.msra.mxu0 %v511
        %533 = vmatprep.subr.mxu0 0.0
        %534 = vmatpush1.msra.mxu0 %v510
        %535 = vmatprep.subr.mxu0 0.0
        %536 = vmatpush1.msra.mxu0 %v509
        %537 = vmatprep.subr.mxu0 0.0
        %538 = vmatpush1.msra.mxu0 %v508
        %539 = vmatprep.subr.mxu0 0.0
        %540 = vmatpush1.msra.mxu0 %v507
        %541 = vmatprep.subr.mxu0 0.0
        %542 = vmatpush1.msra.mxu0 %v506
        %543 = vmatprep.subr.mxu0 0.0
        %544 = vmatpush1.msra.mxu0 %v505
        %545 = vmatprep.subr.mxu0 0.0
        %546 = vmatpush1.msra.mxu0 %v504
        %547 = vmatprep.subr.mxu0 0.0
        %548 = vmatpush1.msra.mxu0 %v503
        %549 = vmatprep.subr.mxu0 0.0
        %550 = vmatpush1.msra.mxu0 %v502
        %551 = vmatprep.subr.mxu0 0.0
        %552 = vmatpush1.msra.mxu0 %v501
        %553 = vmatprep.subr.mxu0 0.0
        %554 = vmatpush1.msra.mxu0 %v500
        %555 = vmatprep.subr.mxu0 0.0
        %556 = vmatpush2.msra.mxu0 0.0
        %557 = vmatprep.subr.mxu0 0.0
        %558 = vmatpush2.msra.mxu0 0.0
        %559 = vmatprep.subr.mxu0 0.0
        %560 = vmatpush2.msra.mxu0 0.0
        %561 = vmatprep.subr.mxu0 0.0
        %562 = vmatpush2.msra.mxu0 0.0
        %563 = vmatprep.subr.mxu0 0.0
        %564 = vmatpush2.msra.mxu0 0.0
        %565 = vmatprep.subr.mxu0 0.0
        %566 = vmatpush2.msra.mxu0 0.0
        %567 = vmatprep.subr.mxu0 0.0
        %568 = vmatpush2.msra.mxu0 0.0
        %569 = vmatprep.subr.mxu0 0.0
        %570 = vmatpush2.msra.mxu0 0.0
        %571 = vmatprep.subr.mxu0 0.0
        %572 = vmatpush2.msra.mxu0 0.0
        %573 = vmatprep.subr.mxu0 0.0
        %574 = vmatpush2.msra.mxu0 0.0
        %575 = vmatprep.subr.mxu0 0.0
        %576 = vmatpush2.msra.mxu0 0.0
        %577 = vmatprep.subr.mxu0 0.0
        %578 = vmatpush2.msra.mxu0 0.0
        %579 = vmatprep.subr.mxu0 0.0
        %580 = vmatpush2.msra.mxu0 0.0
        %581 = vmatprep.subr.mxu0 0.0
        %582 = vmatpush2.msra.mxu0 0.0
        %583 = vmatprep.subr.mxu0 0.0
        %584 = vmatpush2.msra.mxu0 0.0
        %585 = vmatprep.subr.mxu0 0.0
        %586 = vmatpush2.msra.mxu0 0.0
        %587 = vmatprep.mubr.f32.mxu0 0.0
        %588 = vmatmul.mubr.f32.gmra.mxu0 %v496
        %v589 = vpop.f32.mrf.mxu0
        %v590 = vadd.f32 %v521, %v589
        %v591 = vpop.f32.mrf.mxu0
        %592 = vmatprep.mubr.f32.mxu0 0.0
        %593 = vmatmul.mubr.f32.gmra.mxu0 %v497
        %v594 = vpop.f32.mrf.mxu0
        %v595 = vadd.f32 %v521, %v594
        %v596 = vpop.f32.mrf.mxu0
        %597 = vmatprep.mubr.f32.mxu0 0.0
        %598 = vmatmul.mubr.f32.gmra.mxu0 %v498
        %v599 = vpop.f32.mrf.mxu0
        %v600 = vadd.f32 %v521, %v599
        %v601 = vpop.f32.mrf.mxu0
        %602 = vmatprep.mubr.f32.mxu0 0.0
        %603 = vmatmul.mubr.f32.gmra.mxu0 %v499
        %v604 = vpop.f32.mrf.mxu0
        %v605 = vadd.f32 %v521, %v604
        %v606 = vpop.f32.mrf.mxu0
        %607 = vdwg.mxu0
        %vm608 = vcmask 23552
        %609 = vst.msk [vmem:[%s310] sm:$0xff] %vm608, %v590
        %610 = vst.msk [vmem:[%s310 + $0x8] sm:$0xff] %vm608, %v595
        %611 = vst.msk [vmem:[%s310 + $0x10] sm:$0xff] %vm608, %v600
        %612 = vst.msk [vmem:[%s310 + $0x18] sm:$0xff] %vm608, %v605
        %s613 = smul.u32 4, %s20
        %p614 = scmp.lt.s32.totalorder %s613, 7
        %s615 = scalar_select %p614, %s613, 7
        %s616 = smul.addr %s615, 8
        %s617 = scalar_lea.vmem %s7, %s616
        // Predicated region
        $region57: #{spiral_model_forward.1} parent=47 // pred_check
          %p618 = pneg %p190
        $region58: #{spiral_model_forward.1} parent=47 // pred_check_branch
          %620 = sbr.rel (%p618) target = $region60
        $region59: #{spiral_model_forward.1} parent=47 // pred_region
          %s621 = smul.u32 4, %s20
        $region60: #{spiral_model_forward.1} parent=47 // pred_fallthru
          _
      $region48: #{spiral_model_forward.1} parent=5 // pred_fallthru
        _
      %p622 = scmp.le.s32.totalorder 2, %s15
      // Predicated region
      $region61: #{spiral_model_forward.1} parent=5 // pred_check
        %p623 = pneg %p622
      $region62: #{spiral_model_forward.1} parent=5 // pred_check_branch
        %625 = sbr.rel (%p623) target = $region64
      $region63: #{spiral_model_forward.1} parent=5 // pred_region
        %s626 = ssub.s32 %s15, 2
        // Predicated region
        $region65: #{spiral_model_forward.1} parent=63 // pred_check
          %p627 = pneg %p196
        $region66: #{spiral_model_forward.1} parent=63 // pred_check_branch
          %629 = sbr.rel (%p627) target = $region68
        $region67: #{spiral_model_forward.1} parent=63 // pred_region
          %s630 = smul.u32 4, %s21
          %p631 = scmp.lt.s32.totalorder %s630, 7
          %s632 = scalar_select %p631, %s630, 7
          %s633 = smul.addr %s632, 8
          %s634 = scalar_lea.vmem %s7, %s633
        $region68: #{spiral_model_forward.1} parent=63 // pred_fallthru
          _
      $region64: #{spiral_model_forward.1} parent=5 // pred_fallthru
        _
    $region6: #{spiral_model_forward.1} parent=1 // loop_footer
      %s19 = sadd.s32 1, %s15
    $region7: #{spiral_model_forward.1} parent=1 // loop_footer_branch
      %14 = sbr.rel target = $region3
    $region8: #{spiral_model_forward.1} parent=1 // loop_exit
      _
    %635 = vsyncpa [#allocation3], 1
    %s636 = scalar_lea.sflag [#allocation3], 1
    %637 = vsyncpa %s636, 1
    %638 = vsyncpa [#allocation5], 1

</llo_original>
